<compile_context>
chip_gen: v6e
topology: v6e:2x2x1
jax: 0.10.0
libtpu: 0.0.40
codegen_flags: <defaults>
</compile_context>

<pallas_src>
import math
import functools

import jax
import jax.numpy as jnp
from jax.experimental import pallas as pl
from jax.experimental.pallas import tpu as pltpu


# ----------------------------- kernels --------------------------------------

def _add_kernel(x_ref, pe_ref, o_ref):
    # Flat lane-dense tiles: (ts, B*D).  Pure elementwise add.
    o_ref[...] = x_ref[...] + pe_ref[...]


def _add_mask_kernel(x_ref, pe_ref, m_ref, o_ref):
    # Dropout mask is pre-scaled by 1/(1-p) in the wrapper; single fused mul.
    o_ref[...] = (x_ref[...] + pe_ref[...]) * m_ref[...]


# ----------------------------- helpers --------------------------------------

def make_positional_encoding_table(d_model: int, max_len: int = 1024) -> jnp.ndarray:
    """Deterministic replica of the PyTorch buffer (minus the size-1 batch dim)."""
    position = jnp.arange(max_len, dtype=jnp.float32)[:, None]                # [L, 1]
    div_term = jnp.exp(jnp.arange(0, d_model, 2, dtype=jnp.float32)
                       * (-math.log(10000.0) / d_model))                       # [D/2]
    pe = jnp.zeros((max_len, d_model), dtype=jnp.float32)
    pe = pe.at[:, 0::2].set(jnp.sin(position * div_term))
    pe = pe.at[:, 1::2].set(jnp.cos(position * div_term))
    return pe                                                                  # [L, D]


def _pick_seq_tile(S: int, bytes_per_row: int, target_bytes: int = 1 << 20) -> int:
    """Largest seq tile with ~target_bytes per x tile.

    Returns either S itself (full extent, always legal) or a multiple of 8
    that divides S (legal second-to-last block dim)."""
    want = max(1, target_bytes // max(1, bytes_per_row))
    if want >= S:
        return S
    t = (want // 8) * 8
    while t >= 8:
        if S % t == 0:
            return t
        t -= 8
    return S  # fallback: no multiple-of-8 divisor below target -> full extent


# ----------------------------- wrapper --------------------------------------

@functools.partial(jax.jit, static_argnames=("dropout_p", "train"))
def positional_encoding(x, pe, key, *, dropout_p: float = 0.1, train: bool = False):
    """x: [S, B, D], pe: [max_len, D], key: jax PRNG key (used only in train mode)."""
    S, B, D = x.shape
    assert pe.shape[0] >= S and pe.shape[1] == D
    W = B * D

    # Lane-dense layout: collapse (B, D) into the last (lane) axis.
    x2 = x.reshape(S, W)
    # Cast + batch-tile pe once in the wrapper (kernel does no cast/broadcast).
    pe2 = jnp.tile(pe[:S].astype(x.dtype), (1, B))                             # [S, W]

    ts = _pick_seq_tile(S, W * jnp.dtype(x.dtype).itemsize)
    grid = (S // ts,)
    blk = pl.BlockSpec((ts, W), lambda i: (i, 0))
    cparams = pltpu.CompilerParams(
        dimension_semantics=("parallel",),
        vmem_limit_bytes=32 * 1024 * 1024,
    )

    use_dropout = bool(train) and float(dropout_p) > 0.0
    if use_dropout:
        keep = jax.random.bernoulli(key, 1.0 - float(dropout_p), (S, W))
        scale = 1.0 / (1.0 - float(dropout_p))
        mask = jnp.where(keep, scale, 0.0).astype(x.dtype)                     # [S, W]
        out2 = pl.pallas_call(
            _add_mask_kernel,
            out_shape=jax.ShapeDtypeStruct((S, W), x.dtype),
            grid_spec=pltpu.PrefetchScalarGridSpec(
                num_scalar_prefetch=0,
                grid=grid,
                in_specs=[blk, blk, blk],
                out_specs=blk,
            ),
            compiler_params=cparams,
        )(x2, pe2, mask)
    else:
        out2 = pl.pallas_call(
            _add_kernel,
            out_shape=jax.ShapeDtypeStruct((S, W), x.dtype),
            grid_spec=pltpu.PrefetchScalarGridSpec(
                num_scalar_prefetch=0,
                grid=grid,
                in_specs=[blk, blk],
                out_specs=blk,
            ),
            compiler_params=cparams,
        )(x2, pe2)

    return out2.reshape(S, B, D)


# ----------------------------- demo / check ---------------------------------

if __name__ == "__main__":
    # Small shapes consistent with the module: seq=8, batch=2, d_model=32.
    S, B, D = 8, 2, 32
    MAX_LEN = 1024
    DROPOUT_P = 0.1

    root = jax.random.PRNGKey(0)
    kx, kdrop = jax.random.split(root)
    x = jax.random.normal(kx, (S, B, D), dtype=jnp.float32)
    pe = make_positional_encoding_table(D, MAX_LEN)

    ref = x + pe[:S][:, None, :]

    # Eval mode (dropout = identity): must match x + pe[:S] exactly.
    y_eval = jax.block_until_ready(
        positional_encoding(x, pe, kdrop, dropout_p=DROPOUT_P, train=False))
    assert y_eval.shape == (S, B, D)
    assert jnp.allclose(y_eval, ref, atol=1e-6, rtol=1e-6), "eval-mode mismatch"

    # Train mode: inverted dropout -> each entry is either 0 or ref/(1-p).
    y_train = jax.block_until_ready(
        positional_encoding(x, pe, kdrop, dropout_p=DROPOUT_P, train=True))
    assert y_train.shape == (S, B, D)
    assert bool(jnp.all(jnp.isfinite(y_train)))
    kept_matches = jnp.isclose(y_train * (1.0 - DROPOUT_P), ref, atol=1e-5)
    dropped = jnp.isclose(y_train, 0.0, atol=0.0)
    assert bool(jnp.all(kept_matches | dropped)), "train-mode dropout mismatch"

    print("KERNEL_OK")
</pallas_src>

<mosaic_0001>
module attributes {stable_mosaic.version = 11 : i64} {
  func.func @_add_kernel(%arg0: i32, %arg1: memref<8x64xf32, #tpu.memory_space<vmem>>, %arg2: memref<8x64xf32, #tpu.memory_space<vmem>>, %arg3: memref<8x64xf32, #tpu.memory_space<vmem>>) attributes {dimension_semantics = [#tpu.dimension_semantics<parallel>], iteration_bounds = array<i64: 1>, scalar_prefetch = 0 : i64, scratch_operands = 0 : i64, tpu.core_type = #tpu.core_type<tc>, window_params = [{transform_indices = @transform_0, window_bounds = array<i64: 8, 64>}, {transform_indices = @transform_1, window_bounds = array<i64: 8, 64>}, {transform_indices = @transform_2, window_bounds = array<i64: 8, 64>}]} {
    %c0 = arith.constant 0 : index
    %c0_0 = arith.constant 0 : index
    %0 = vector.load %arg1[%c0, %c0_0] : memref<8x64xf32, #tpu.memory_space<vmem>>, vector<8x64xf32>
    %c0_1 = arith.constant 0 : index
    %c0_2 = arith.constant 0 : index
    %1 = vector.load %arg2[%c0_1, %c0_2] : memref<8x64xf32, #tpu.memory_space<vmem>>, vector<8x64xf32>
    %2 = arith.addf %0, %1 : vector<8x64xf32>
    %c0_3 = arith.constant 0 : index
    %c0_4 = arith.constant 0 : index
    %3 = vector.load %arg3[%c0_3, %c0_4] : memref<8x64xf32, #tpu.memory_space<vmem>>, vector<8x64xf32>
    tpu.vector_store %arg3[%c0_3, %c0_4], %2 {strides = array<i32>} : memref<8x64xf32, #tpu.memory_space<vmem>>, vector<8x64xf32>,
    return
  }
  func.func @transform_0(%arg0: i32) -> (i32, i32) {
    %c0_i32 = arith.constant 0 : i32
    %c0_i32_0 = arith.constant 0 : i32
    return %arg0, %c0_i32 : i32, i32
  }
  func.func @transform_1(%arg0: i32) -> (i32, i32) {
    %c0_i32 = arith.constant 0 : i32
    %c0_i32_0 = arith.constant 0 : i32
    return %arg0, %c0_i32 : i32, i32
  }
  func.func @transform_2(%arg0: i32) -> (i32, i32) {
    %c0_i32 = arith.constant 0 : i32
    %c0_i32_0 = arith.constant 0 : i32
    return %arg0, %c0_i32 : i32, i32
  }
}

</mosaic_0001>

<llo_original>
// kernel: tile.9
$region0: #{tile.9}
  %s0 = inlined_call_operand.vmem [shape: f32[8,2,32], index: 0, kind: input, shape index: {}]
  %s1 = inlined_call_operand.vmem [shape: f32[8,64], index: 1, kind: output, shape index: {}]
  $region1: #{tile.9} parent=0
    #allocation0 [shape = 'u8[32768]{0}', space=vmem, size = 0x8000, scoped, tag = 'scoped mem for input reshape']
    %s3 = sshll.u32 1, 2
    %s4 = ssub.s32 %s3, 1
    %s5 = smul.addr 2, 7
    %s6 = scalar_lea.vmem %s0, %s5
    %v7 = vld [vmem:[%s6] sm:%s4]
    %s8 = scalar_lea.vmem [#allocation0], 56
    %9 = vst [vmem:[%s8] sm:%s4] %v7
    %s10 = smul.addr 2, 6
    %s11 = scalar_lea.vmem %s0, %s10
    %v12 = vld [vmem:[%s11] sm:%s4]
    %s13 = scalar_lea.vmem [#allocation0], 48
    %14 = vst [vmem:[%s13] sm:%s4] %v12
    %s15 = smul.addr 2, 5
    %s16 = scalar_lea.vmem %s0, %s15
    %v17 = vld [vmem:[%s16] sm:%s4]
    %s18 = scalar_lea.vmem [#allocation0], 40
    %19 = vst [vmem:[%s18] sm:%s4] %v17
    %s20 = smul.addr 2, 4
    %s21 = scalar_lea.vmem %s0, %s20
    %v22 = vld [vmem:[%s21] sm:%s4]
    %s23 = scalar_lea.vmem [#allocation0], 32
    %24 = vst [vmem:[%s23] sm:%s4] %v22
    %s25 = smul.addr 2, 3
    %s26 = scalar_lea.vmem %s0, %s25
    %v27 = vld [vmem:[%s26] sm:%s4]
    %s28 = scalar_lea.vmem [#allocation0], 24
    %29 = vst [vmem:[%s28] sm:%s4] %v27
    %s30 = smul.addr 2, 2
    %s31 = scalar_lea.vmem %s0, %s30
    %v32 = vld [vmem:[%s31] sm:%s4]
    %s33 = scalar_lea.vmem [#allocation0], 16
    %34 = vst [vmem:[%s33] sm:%s4] %v32
    %s35 = scalar_lea.vmem %s0, 2
    %v36 = vld [vmem:[%s35] sm:%s4]
    %s37 = scalar_lea.vmem [#allocation0], 8
    %38 = vst [vmem:[%s37] sm:%s4] %v36
    %v39 = vld [vmem:[%s0] sm:%s4]
    %40 = vst [vmem:[#allocation0] sm:%s4] %v39
    %v41 = vld [vmem:[#allocation0] ss:$8 sm:$0xf]
    %v42 = vld [vmem:[#allocation0] ss:$8 sm:$0xf0]
    %vm43 = vcmask 1047556
    %v44 = vsel %vm43, %v42, %v41
    %vm45 = vcmask 261120
    %46 = vst.msk [vmem:[%s1] sm:$0xff] %vm45, %v44
    %s47 = scalar_lea.vmem [#allocation0], 1
    %v48 = vld [vmem:[%s47] ss:$8 sm:$0xf]
    %s49 = scalar_lea.vmem [#allocation0], 1
    %v50 = vld [vmem:[%s49] ss:$8 sm:$0xf0]
    %vm51 = vcmask 1047556
    %v52 = vsel %vm51, %v50, %v48
    %53 = vrot.lane.b32.xlu0 %v52, 32
    %v54 = vpop.permute.xlu0 %53
    %vm55 = vcmask 523520
    %56 = vst.msk [vmem:[%s1] sm:$0xff] %vm55, %v54

// kernel: positional_encoding.1
$region0: #{positional_encoding.1}
  #allocation0 [shape = 'u32[]', space=smem, size = 0x4, offset = 0x4, fixed_abs, tag = 'smem constant byte address 0x4 - core index']
  #allocation1 [shape = 'u32[144,128]{1,0:T(1,128)}', space=vmem, size = 0x12000, scoped, tag = 'internal scratch']
  %s0 = inlined_call_operand.vmem [shape: f32[8,64], index: 0, kind: input, shape index: {}]
  %s1 = inlined_call_operand.vmem [shape: f32[8,64], index: 1, kind: input, shape index: {}]
  %s2 = inlined_call_operand.vmem [shape: f32[8,64], index: 2, kind: output, shape index: {}]
  %s3 = sld [smem:[#allocation0]]
  $region18: #{positional_encoding.1} parent=0
    _
  %s5 = ssub.s32 1, %s3
  %s6 = scalar_select 0, %s5, %s3
  // Predicated region
  $region2: #{positional_encoding.1} parent=0 // pred_check
    _
  $region3: #{positional_encoding.1} parent=0 // pred_check_branch
    %8 = sbr.rel (0) target = $region5
  $region4: #{positional_encoding.1} parent=0 // pred_region
    _
  $region5: #{positional_encoding.1} parent=0 // pred_fallthru
    _
  // Predicated region
  $region6: #{positional_encoding.1} parent=0 // pred_check
    _
  $region7: #{positional_encoding.1} parent=0 // pred_check_branch
    %10 = sbr.rel (0) target = $region9
  $region8: #{positional_encoding.1} parent=0 // pred_region
    _
  $region9: #{positional_encoding.1} parent=0 // pred_fallthru
    _
  %v11 = vld [vmem:[%s0] sm:$0xff]
  %v12 = vld [vmem:[%s1] sm:$0xff]
  %v13 = vadd.f32 %v11, %v12
  %vm14 = vcmask 523264
  %15 = vst.msk [vmem:[%s2] sm:$0xff] %vm14, %v13
  // Predicated region
  $region10: #{positional_encoding.1} parent=0 // pred_check
    _
  $region11: #{positional_encoding.1} parent=0 // pred_check_branch
    %17 = sbr.rel (0) target = $region13
  $region12: #{positional_encoding.1} parent=0 // pred_region
    _
  $region13: #{positional_encoding.1} parent=0 // pred_fallthru
    _
  // Predicated region
  $region14: #{positional_encoding.1} parent=0 // pred_check
    _
  $region15: #{positional_encoding.1} parent=0 // pred_check_branch
    %19 = sbr.rel (0) target = $region17
  $region16: #{positional_encoding.1} parent=0 // pred_region
    _
  $region17: #{positional_encoding.1} parent=0 // pred_fallthru
    _

</llo_original>
